<compile_context>
chip_gen: v7x
topology: tpu7x:2x2x1
jax: 0.10.0
libtpu: 0.0.40
codegen_flags: <defaults>
</compile_context>

<pallas_src>
import functools

import jax
import jax.numpy as jnp
from jax.experimental import pallas as pl
from jax.experimental.pallas import tpu as pltpu


def _round_up(x, m):
    return (x + m - 1) // m * m


def _policy_kernel(state_ref, slab_ref, bias_ref, out_ref, *, action_dim):
    """Fused actor-critic forward for one batch tile.

    state_ref: (Bt, A, Dp) f32 movie embeddings (Dp = 16-aligned embed dim).
    slab_ref:  (Dp + 2*Cw, Cw) bf16 packed weights:
                 rows [0, Dp)         : [pw1 | vw1]
                 rows [Dp, Dp+Cw)     : blockdiag(pw2, vw2)
                 rows [Dp+Cw, Dp+2Cw) : pw3 -> cols [0, A), vw3 -> col A
    bias_ref:  (8, Cw) f32. Row 0 = [pb1|vb1], row 1 = [pb2|vb2],
               row 2 = [pb3 | vb3], rest zero.
    out_ref:   (Bt, Cw) f32. Lanes [0, A) = action probs, lane A = state value.
    """
    A = action_dim
    Cw = slab_ref.shape[1]
    Dp = slab_ref.shape[0] - 2 * Cw
    Bt = out_ref.shape[0]

    # Aggregate movie embeddings per state (exact f32 mean over the movie axis;
    # sublane reduce on the otherwise-idle XLU).
    agg = jnp.mean(state_ref[...], axis=1)                        # (Bt, Dp) f32
    aggb = agg.astype(jnp.bfloat16)

    # Static, 16-sublane-aligned views into the packed bf16 weight slab.
    w1 = slab_ref[0:Dp, :]                                        # (Dp, Cw)
    w2 = slab_ref[Dp:Dp + Cw, :]                                  # (Cw, Cw)
    w3 = slab_ref[Dp + Cw:Dp + 2 * Cw, :]                         # (Cw, Cw)
    b1 = bias_ref[0:1, :]                                         # f32 (1, Cw)
    b2 = bias_ref[1:2, :]
    b3 = bias_ref[2:3, :]

    # Three fused (both heads at once) matmuls, bf16 MXU with f32 accumulation.
    h1 = jnp.maximum(
        jnp.dot(aggb, w1, preferred_element_type=jnp.float32) + b1, 0.0)
    h2 = jnp.maximum(
        jnp.dot(h1.astype(jnp.bfloat16), w2,
                preferred_element_type=jnp.float32) + b2, 0.0)
    lv = jnp.dot(h2.astype(jnp.bfloat16), w3,
                 preferred_element_type=jnp.float32) + b3         # (Bt, Cw)
    # lv lanes [0, A) = policy logits, lane A = value, lanes > A are zero.

    # Masked, numerically stable, exact softmax over lanes [0, A).
    col = jax.lax.broadcasted_iota(jnp.int32, (Bt, Cw), 1)
    logits = jnp.where(col < A, lv, -1e30)                        # pre-mask
    m = jnp.max(logits, axis=-1, keepdims=True)
    e = jnp.exp(logits - m)                                       # dead lanes -> exactly 0
    s = jnp.sum(e, axis=-1, keepdims=True)
    probs = e / s                                                 # exact divide

    # Lane-dense unmasked store: probs in [0, A), value at lane A, zeros after.
    out_ref[...] = probs + jnp.where(col == A, lv, 0.0)


def pack_params(params):
    """Packs weights into one 16-row / 128-lane aligned bf16 slab plus a small
    separate f32 bias block (so biases stay full precision)."""
    pw1, vw1 = params["pw1"], params["vw1"]
    pw2, vw2 = params["pw2"], params["vw2"]
    pw3, vw3 = params["pw3"], params["vw3"]
    D, H = pw1.shape
    A = pw3.shape[1]
    H2 = 2 * H
    Cw = _round_up(max(H2, A + 1), 128)
    Dp = _round_up(D, 16)           # 16-sublane alignment for bf16 slab slices
    n_rows = Dp + 2 * Cw

    slab = jnp.zeros((n_rows, Cw), jnp.float32)
    # Layer 1: [pw1 | vw1]
    slab = slab.at[0:D, 0:H].set(pw1)
    slab = slab.at[0:D, H:H2].set(vw1)
    # Layer 2: blockdiag(pw2, vw2)
    slab = slab.at[Dp:Dp + H, 0:H].set(pw2)
    slab = slab.at[Dp + H:Dp + H2, H:H2].set(vw2)
    # Layer 3: pw3 -> cols [0, A), vw3 -> col A
    r3 = Dp + Cw
    slab = slab.at[r3:r3 + H, 0:A].set(pw3)
    slab = slab.at[r3 + H:r3 + H2, A:A + 1].set(vw3)
    slab = slab.astype(jnp.bfloat16)

    biases = jnp.zeros((8, Cw), jnp.float32)
    biases = biases.at[0, 0:H].set(params["pb1"])
    biases = biases.at[0, H:H2].set(params["vb1"])
    biases = biases.at[1, 0:H].set(params["pb2"])
    biases = biases.at[1, H:H2].set(params["vb2"])
    biases = biases.at[2, 0:A].set(params["pb3"])
    biases = biases.at[2, A:A + 1].set(params["vb3"])
    return slab, biases


def policy_model_forward(states, slab, biases, action_dim, block_b=128):
    """Batched fused PolicyModel forward.

    Args:
      states: (B, A, D) f32 batch of movie-embedding states, or (A, D) for a
        single state (module-equivalent call).
      slab, biases: packed parameters from pack_params().
      action_dim: number of actions A.
      block_b: batch tile (multiple of 8; use 128 (v5e) / 256 (v6e, v7x) for
        MXU-native tiles on large batches).

    Returns:
      (action_probs, state_value): ((B, A), (B, 1)) f32, or ((A,), (1,)) for a
      single-state input.
    """
    assert block_b % 8 == 0
    states = jnp.asarray(states, jnp.float32)
    squeeze = states.ndim == 2
    if squeeze:
        states = states[None]
    B, A, D = states.shape
    n_rows, Cw = slab.shape
    Dp = n_rows - 2 * Cw

    # Pad the embedding dim to the slab's 16-aligned contraction dim (the
    # matching slab rows are zero, so padding is inert).
    if Dp > D:
        states = jnp.pad(states, ((0, 0), (0, 0), (0, Dp - D)))
    # Pad the batch to a multiple of the (8-aligned) batch tile.
    Bt = min(block_b, _round_up(B, 8))
    Bp = _round_up(B, Bt)
    if Bp > B:
        states = jnp.pad(states, ((0, Bp - B), (0, 0), (0, 0)))

    grid = (Bp // Bt,)
    flops = 2 * Bp * Cw * (Dp + 2 * Cw)
    bytes_accessed = (states.size * 4 + slab.size * 2 + biases.size * 4
                      + Bp * Cw * 4)

    out = pl.pallas_call(
        functools.partial(_policy_kernel, action_dim=action_dim),
        out_shape=jax.ShapeDtypeStruct((Bp, Cw), jnp.float32),
        grid=grid,
        in_specs=[
            pl.BlockSpec((Bt, A, Dp), lambda b: (b, 0, 0)),   # per-tile states
            pl.BlockSpec((n_rows, Cw), lambda b: (0, 0)),     # weights: resident
            pl.BlockSpec((8, Cw), lambda b: (0, 0)),          # biases: resident
        ],
        out_specs=pl.BlockSpec((Bt, Cw), lambda b: (b, 0)),
        compiler_params=pltpu.CompilerParams(
            dimension_semantics=("parallel",)),               # 2 TCs on v7x
        cost_estimate=pl.CostEstimate(
            flops=flops, transcendentals=Bp * Cw,
            bytes_accessed=bytes_accessed),
    )(states, slab, biases)

    probs = out[:B, :action_dim]
    values = out[:B, action_dim:action_dim + 1]
    if squeeze:
        return probs[0], values[0]
    return probs, values


def init_params(key, embedding_dim, action_dim, hidden_dim):
    """PyTorch nn.Linear-style init (U(-1/sqrt(fan_in), 1/sqrt(fan_in))).
    Weights stored as (in_features, out_features); biases 1D."""
    def linear(key, fan_in, fan_out):
        kw, kb = jax.random.split(key)
        bound = 1.0 / jnp.sqrt(float(fan_in))
        w = jax.random.uniform(kw, (fan_in, fan_out), jnp.float32, -bound, bound)
        b = jax.random.uniform(kb, (fan_out,), jnp.float32, -bound, bound)
        return w, b

    keys = jax.random.split(key, 6)
    pw1, pb1 = linear(keys[0], embedding_dim, hidden_dim)
    pw2, pb2 = linear(keys[1], hidden_dim, hidden_dim)
    pw3, pb3 = linear(keys[2], hidden_dim, action_dim)
    vw1, vb1 = linear(keys[3], embedding_dim, hidden_dim)
    vw2, vb2 = linear(keys[4], hidden_dim, hidden_dim)
    vw3, vb3 = linear(keys[5], hidden_dim, 1)
    return dict(pw1=pw1, pb1=pb1, pw2=pw2, pb2=pb2, pw3=pw3, pb3=pb3,
                vw1=vw1, vb1=vb1, vw2=vw2, vb2=vb2, vw3=vw3, vb3=vb3)


def _reference_forward(states, params):
    """Pure-JAX reference matching the kernel's precision (bf16 weights and
    activations into each matmul, f32 biases, f32 accumulation)."""
    bf = lambda x: x.astype(jnp.bfloat16)

    def dense(x_bf16, w, b):
        y = jnp.dot(x_bf16, bf(w), preferred_element_type=jnp.float32)
        return y + b.astype(jnp.float32)

    agg = jnp.mean(states, axis=1)                       # (B, D)
    a = bf(agg)
    h = jnp.maximum(dense(a, params["pw1"], params["pb1"]), 0.0)
    h = jnp.maximum(dense(bf(h), params["pw2"], params["pb2"]), 0.0)
    logits = dense(bf(h), params["pw3"], params["pb3"])
    probs = jax.nn.softmax(logits, axis=-1)
    g = jnp.maximum(dense(a, params["vw1"], params["vb1"]), 0.0)
    g = jnp.maximum(dense(bf(g), params["vw2"], params["vb2"]), 0.0)
    value = dense(bf(g), params["vw3"], params["vb3"])
    return probs, value


if __name__ == "__main__":
    # Small shapes consistent with the module: 25 movies (= action_dim) per
    # state; reduced embedding/hidden dims; a small batch of states to
    # exercise the grid + resident weight slab.
    embedding_dim = 64
    action_dim = 25
    hidden_dim = 32
    batch = 16

    key = jax.random.PRNGKey(0)
    k_state, k_params = jax.random.split(key)
    states = jax.random.normal(
        k_state, (batch, action_dim, embedding_dim), jnp.float32)
    params = init_params(k_params, embedding_dim, action_dim, hidden_dim)
    slab, biases = pack_params(params)

    # Batched forward (block_b=8 -> grid of 2 steps, weights DMA'd once).
    probs, values = policy_model_forward(states, slab, biases, action_dim,
                                         block_b=8)
    probs = jax.block_until_ready(probs)
    values = jax.block_until_ready(values)

    # Correctness vs precision-matched pure-JAX reference.
    ref_probs, ref_values = _reference_forward(states, params)
    assert probs.shape == (batch, action_dim)
    assert values.shape == (batch, 1)
    assert jnp.allclose(probs, ref_probs, atol=5e-3, rtol=5e-3)
    assert jnp.allclose(values, ref_values, atol=5e-3, rtol=5e-3)
    assert jnp.allclose(jnp.sum(probs, axis=-1), 1.0, atol=1e-5)

    # Unbatched (module-equivalent) call path: state of shape (25, D).
    p1, v1 = policy_model_forward(states[0], slab, biases, action_dim)
    p1 = jax.block_until_ready(p1)
    v1 = jax.block_until_ready(v1)
    assert p1.shape == (action_dim,) and v1.shape == (1,)
    assert jnp.allclose(p1, ref_probs[0], atol=5e-3, rtol=5e-3)
    assert jnp.allclose(v1, ref_values[0], atol=5e-3, rtol=5e-3)

    print("KERNEL_OK")
</pallas_src>

<mosaic_0001>
module attributes {stable_mosaic.version = 11 : i64} {
  func.func @_policy_kernel(%arg0: i32, %arg1: memref<8x25x64xf32, #tpu.memory_space<vmem>>, %arg2: memref<320x128xbf16, #tpu.memory_space<vmem>>, %arg3: memref<8x128xf32, #tpu.memory_space<vmem>>, %arg4: memref<8x128xf32, #tpu.memory_space<vmem>>) attributes {dimension_semantics = [#tpu.dimension_semantics<parallel>], iteration_bounds = array<i64: 2>, scalar_prefetch = 0 : i64, scratch_operands = 0 : i64, tpu.core_type = #tpu.core_type<tc>, window_params = [{transform_indices = @transform_0, window_bounds = array<i64: 8, 25, 64>}, {pipeline_mode = #tpu.pipeline_mode<synchronous>, transform_indices = @transform_1, window_bounds = array<i64: 320, 128>}, {pipeline_mode = #tpu.pipeline_mode<synchronous>, transform_indices = @transform_2, window_bounds = array<i64: 8, 128>}, {transform_indices = @transform_3, window_bounds = array<i64: 8, 128>}]} {
    %c0 = arith.constant 0 : index
    %c0_0 = arith.constant 0 : index
    %c0_1 = arith.constant 0 : index
    %0 = vector.load %arg1[%c0, %c0_0, %c0_1] : memref<8x25x64xf32, #tpu.memory_space<vmem>>, vector<8x25x64xf32>
    %cst = arith.constant dense<0.000000e+00> : vector<8x64xf32>
    %1 = vector.multi_reduction <add>, %0, %cst [1] : vector<8x25x64xf32> to vector<8x64xf32>
    %cst_2 = arith.constant 2.500000e+01 : f32
    %2 = vector.broadcast %cst_2 : f32 to vector<8x64xf32>
    %3 = arith.divf %1, %2 : vector<8x64xf32>
    %4 = arith.truncf %3 : vector<8x64xf32> to vector<8x64xbf16>
    %c0_3 = arith.constant 0 : index
    %c0_4 = arith.constant 0 : index
    %5 = vector.load %arg2[%c0_3, %c0_4] : memref<320x128xbf16, #tpu.memory_space<vmem>>, vector<64x128xbf16>
    %c64 = arith.constant 64 : index
    %c0_5 = arith.constant 0 : index
    %6 = vector.load %arg2[%c64, %c0_5] : memref<320x128xbf16, #tpu.memory_space<vmem>>, vector<128x128xbf16>
    %c192 = arith.constant 192 : index
    %c0_6 = arith.constant 0 : index
    %7 = vector.load %arg2[%c192, %c0_6] : memref<320x128xbf16, #tpu.memory_space<vmem>>, vector<128x128xbf16>
    %c0_7 = arith.constant 0 : index
    %c0_8 = arith.constant 0 : index
    %8 = vector.load %arg3[%c0_7, %c0_8] : memref<8x128xf32, #tpu.memory_space<vmem>>, vector<1x128xf32>
    %c1 = arith.constant 1 : index
    %c0_9 = arith.constant 0 : index
    %9 = vector.load %arg3[%c1, %c0_9] : memref<8x128xf32, #tpu.memory_space<vmem>>, vector<1x128xf32>
    %c2 = arith.constant 2 : index
    %c0_10 = arith.constant 0 : index
    %10 = vector.load %arg3[%c2, %c0_10] : memref<8x128xf32, #tpu.memory_space<vmem>>, vector<1x128xf32>
    %cst_11 = arith.constant dense<0.000000e+00> : vector<8x128xf32>
    %11 = tpu.matmul %4, %5, %cst_11 {dimension_numbers = #tpu.dot_dimension_numbers<[1], [0], [0], [1], [0, 0, 1, 1], [], []>} : vector<8x64xbf16>, vector<64x128xbf16>, vector<8x128xf32> -> vector<8x128xf32>
    %12 = vector.broadcast %8 : vector<1x128xf32> to vector<8x128xf32>
    %13 = arith.addf %11, %12 : vector<8x128xf32>
    %cst_12 = arith.constant 0.000000e+00 : f32
    %14 = vector.broadcast %cst_12 : f32 to vector<8x128xf32>
    %15 = arith.maximumf %13, %14 : vector<8x128xf32>
    %16 = arith.truncf %15 : vector<8x128xf32> to vector<8x128xbf16>
    %cst_13 = arith.constant dense<0.000000e+00> : vector<8x128xf32>
    %17 = tpu.matmul %16, %6, %cst_13 {dimension_numbers = #tpu.dot_dimension_numbers<[1], [0], [0], [1], [0, 0, 1, 1], [], []>} : vector<8x128xbf16>, vector<128x128xbf16>, vector<8x128xf32> -> vector<8x128xf32>
    %18 = vector.broadcast %9 : vector<1x128xf32> to vector<8x128xf32>
    %19 = arith.addf %17, %18 : vector<8x128xf32>
    %cst_14 = arith.constant 0.000000e+00 : f32
    %20 = vector.broadcast %cst_14 : f32 to vector<8x128xf32>
    %21 = arith.maximumf %19, %20 : vector<8x128xf32>
    %22 = arith.truncf %21 : vector<8x128xf32> to vector<8x128xbf16>
    %cst_15 = arith.constant dense<0.000000e+00> : vector<8x128xf32>
    %23 = tpu.matmul %22, %7, %cst_15 {dimension_numbers = #tpu.dot_dimension_numbers<[1], [0], [0], [1], [0, 0, 1, 1], [], []>} : vector<8x128xbf16>, vector<128x128xbf16>, vector<8x128xf32> -> vector<8x128xf32>
    %24 = vector.broadcast %10 : vector<1x128xf32> to vector<8x128xf32>
    %25 = arith.addf %23, %24 : vector<8x128xf32>
    %26 = tpu.iota {dimensions = array<i32: 1>} : vector<8x128xi32>
    %c25_i32 = arith.constant 25 : i32
    %27 = vector.broadcast %c25_i32 : i32 to vector<8x128xi32>
    %28 = arith.cmpi slt, %26, %27 : vector<8x128xi32>
    %cst_16 = arith.constant -1.000000e+30 : f32
    %29 = vector.broadcast %cst_16 : f32 to vector<8x128xf32>
    %30 = arith.select %28, %25, %29 : vector<8x128xi1>, vector<8x128xf32>
    %cst_17 = arith.constant dense<0xFF800000> : vector<8xf32>
    %31 = vector.multi_reduction <maximumf>, %30, %cst_17 [1] : vector<8x128xf32> to vector<8xf32>
    %32 = vector.shape_cast %31 : vector<8xf32> to vector<8x1xf32>
    %33 = vector.broadcast %32 : vector<8x1xf32> to vector<8x128xf32>
    %34 = arith.subf %30, %33 : vector<8x128xf32>
    %35 = math.exp %34 : vector<8x128xf32>
    %cst_18 = arith.constant dense<0.000000e+00> : vector<8xf32>
    %36 = vector.multi_reduction <add>, %35, %cst_18 [1] : vector<8x128xf32> to vector<8xf32>
    %37 = vector.shape_cast %36 : vector<8xf32> to vector<8x1xf32>
    %38 = vector.broadcast %37 : vector<8x1xf32> to vector<8x128xf32>
    %39 = arith.divf %35, %38 : vector<8x128xf32>
    %c25_i32_19 = arith.constant 25 : i32
    %40 = vector.broadcast %c25_i32_19 : i32 to vector<8x128xi32>
    %41 = arith.cmpi eq, %26, %40 : vector<8x128xi32>
    %cst_20 = arith.constant 0.000000e+00 : f32
    %42 = vector.broadcast %cst_20 : f32 to vector<8x128xf32>
    %43 = arith.select %41, %25, %42 : vector<8x128xi1>, vector<8x128xf32>
    %44 = arith.addf %39, %43 : vector<8x128xf32>
    %c0_21 = arith.constant 0 : index
    %c0_22 = arith.constant 0 : index
    %45 = vector.load %arg4[%c0_21, %c0_22] : memref<8x128xf32, #tpu.memory_space<vmem>>, vector<8x128xf32>
    tpu.vector_store %arg4[%c0_21, %c0_22], %44 {strides = array<i32>} : memref<8x128xf32, #tpu.memory_space<vmem>>, vector<8x128xf32>,
    return
  }
  func.func @transform_0(%arg0: i32) -> (i32, i32, i32) {
    %c0_i32 = arith.constant 0 : i32
    %c0_i32_0 = arith.constant 0 : i32
    %c0_i32_1 = arith.constant 0 : i32
    return %arg0, %c0_i32, %c0_i32_0 : i32, i32, i32
  }
  func.func @transform_1(%arg0: i32) -> (i32, i32) {
    %c0_i32 = arith.constant 0 : i32
    %c0_i32_0 = arith.constant 0 : i32
    %c0_i32_1 = arith.constant 0 : i32
    return %c0_i32, %c0_i32_0 : i32, i32
  }
  func.func @transform_2(%arg0: i32) -> (i32, i32) {
    %c0_i32 = arith.constant 0 : i32
    %c0_i32_0 = arith.constant 0 : i32
    %c0_i32_1 = arith.constant 0 : i32
    return %c0_i32, %c0_i32_0 : i32, i32
  }
  func.func @transform_3(%arg0: i32) -> (i32, i32) {
    %c0_i32 = arith.constant 0 : i32
    %c0_i32_0 = arith.constant 0 : i32
    return %arg0, %c0_i32 : i32, i32
  }
}

</mosaic_0001>

<llo_original>
// kernel: tpu_custom_call.1
$region0: #{tpu_custom_call.1}
  #allocation0 [shape = 'u32[]', space=smem, size = 0x4, offset = 0x4, fixed_abs, tag = 'smem constant byte address 0x4 - core index']
  #allocation1 [shape = 'u32[144,128]{1,0:T(1,128)}', space=vmem, size = 0x12000, scoped, tag = 'internal scratch']
  %s0 = inlined_call_operand.vmem [shape: f32[16,25,64], index: 0, kind: input, shape index: {}]
  %s1 = inlined_call_operand.vmem [shape: bf16[320,128], index: 1, kind: input, shape index: {}]
  %s2 = inlined_call_operand.vmem [shape: f32[8,128], index: 2, kind: input, shape index: {}]
  %s3 = inlined_call_operand.hbm [shape: f32[16,128], index: 3, kind: output, shape index: {}]
  %s4 = sld [smem:[#allocation0]]
  $region45: #{tpu_custom_call.1} parent=0
    _
  %s6 = ssub.s32 1, %s4
  %s7 = scalar_select 0, %s6, %s4
  $region1: #{tpu_custom_call.1} parent=0
    #allocation2 [shape = 'u8[8192]{0}', space=vmem, size = 0x2000, scoped, tag = 'output window, operand 0']
    #allocation3 [shape = 's32[2]{0}', space=sflag, size = 0x8, scoped, tag = 'scoped memory for tpu_custom_call.1']
    %8 = vsyncpa [#allocation3], 0
    %s9 = scalar_lea.sflag [#allocation3], 1
    %10 = vsyncpa %s9, 0
    loop: start=0, step=1, limit=4
    $region2: #{tpu_custom_call.1} parent=1 // loop_pre_header
      _
    $region3: #{tpu_custom_call.1} parent=1 // loop_header
      %s12 = sphi 0, %s16
      %p13 = scmp.ge.s32.totalorder %s12, 4
      %s22 = sphi 0, %s24
      %s25 = sphi 0, %s22
      %s26 = sphi 0, %s25
      %s42 = sphi 0, %s26
      %s46 = sphi 0, %s46
      %s48 = sphi 0, %s46
      %s49 = sphi 0, %s48
      %s63 = sphi 0, %s49
      %s67 = sphi 0, %s67
      %s69 = sphi 0, %s67
      %s70 = sphi 0, %s69
      %s84 = sphi 0, %s70
      %s90 = sphi 0, %s92
      %s93 = sphi 0, %s90
      %s94 = sphi 0, %s93
      %s110 = sphi 0, %s94
    $region4: #{tpu_custom_call.1} parent=1 // loop_header_branch
      %15 = sbr.rel (%p13) target = $region8
    $region5: #{tpu_custom_call.1} parent=1 // loop_body
      %s17 = ssub.s32 %s12, 1
      %s18 = ssub.s32 %s12, 2
      %s19 = sadd.s32 %s12, 1
      %s20 = ssub.s32 %s12, %s19
      %p21 = scmp.eq.s32.totalorder %s20, 0
      %s23 = sadd.s32 %s22, 1
      %s24 = scalar_select %p21, %s22, %s23
      %p27 = pneg %p21
      %p28 = scmp.eq.s32.totalorder %s12, 1
      %p29 = por %p27, %p28
      %p30 = scmp.ne.s32.totalorder %s22, %s25
      %p31 = scmp.eq.s32.totalorder %s12, 0
      %p32 = por %p30, %p31
      %p33 = scmp.ne.s32.totalorder %s22, %s25
      %p34 = scmp.eq.s32.totalorder %s17, 1
      %p35 = por %p33, %p34
      %p36 = scmp.ne.s32.totalorder %s25, %s26
      %p37 = scmp.eq.s32.totalorder %s17, 0
      %p38 = por %p36, %p37
      %p39 = scmp.ne.s32.totalorder %s25, %s26
      %p40 = scmp.eq.s32.totalorder %s18, 1
      %p41 = por %p39, %p40
      %p43 = scmp.ne.s32.totalorder %s26, %s42
      %p44 = scmp.eq.s32.totalorder %s18, 0
      %p45 = por %p43, %p44
      %s47 = sadd.s32 %s46, 1
      %p50 = scmp.eq.s32.totalorder %s12, 1
      %p51 = scmp.ne.s32.totalorder %s46, %s48
      %p52 = scmp.eq.s32.totalorder %s12, 0
      %p53 = por %p51, %p52
      %p54 = scmp.ne.s32.totalorder %s46, %s48
      %p55 = scmp.eq.s32.totalorder %s17, 1
      %p56 = por %p54, %p55
      %p57 = scmp.ne.s32.totalorder %s48, %s49
      %p58 = scmp.eq.s32.totalorder %s17, 0
      %p59 = por %p57, %p58
      %p60 = scmp.ne.s32.totalorder %s48, %s49
      %p61 = scmp.eq.s32.totalorder %s18, 1
      %p62 = por %p60, %p61
      %p64 = scmp.ne.s32.totalorder %s49, %s63
      %p65 = scmp.eq.s32.totalorder %s18, 0
      %p66 = por %p64, %p65
      %s68 = sadd.s32 %s67, 1
      %p71 = scmp.eq.s32.totalorder %s12, 1
      %p72 = scmp.ne.s32.totalorder %s67, %s69
      %p73 = scmp.eq.s32.totalorder %s12, 0
      %p74 = por %p72, %p73
      %p75 = scmp.ne.s32.totalorder %s67, %s69
      %p76 = scmp.eq.s32.totalorder %s17, 1
      %p77 = por %p75, %p76
      %p78 = scmp.ne.s32.totalorder %s69, %s70
      %p79 = scmp.eq.s32.totalorder %s17, 0
      %p80 = por %p78, %p79
      %p81 = scmp.ne.s32.totalorder %s69, %s70
      %p82 = scmp.eq.s32.totalorder %s18, 1
      %p83 = por %p81, %p82
      %p85 = scmp.ne.s32.totalorder %s70, %s84
      %p86 = scmp.eq.s32.totalorder %s18, 0
      %p87 = por %p85, %p86
      %s88 = ssub.s32 %s12, %s19
      %p89 = scmp.eq.s32.totalorder %s88, 0
      %s91 = sadd.s32 %s90, 1
      %s92 = scalar_select %p89, %s90, %s91
      %p95 = pneg %p89
      %p96 = scmp.eq.s32.totalorder %s12, 1
      %p97 = por %p95, %p96
      %p98 = scmp.ne.s32.totalorder %s90, %s93
      %p99 = scmp.eq.s32.totalorder %s12, 0
      %p100 = por %p98, %p99
      %p101 = scmp.ne.s32.totalorder %s90, %s93
      %p102 = scmp.eq.s32.totalorder %s17, 1
      %p103 = por %p101, %p102
      %p104 = scmp.ne.s32.totalorder %s93, %s94
      %p105 = scmp.eq.s32.totalorder %s17, 0
      %p106 = por %p104, %p105
      %p107 = scmp.ne.s32.totalorder %s93, %s94
      %p108 = scmp.eq.s32.totalorder %s18, 1
      %p109 = por %p107, %p108
      %p111 = scmp.ne.s32.totalorder %s94, %s110
      %p112 = scmp.eq.s32.totalorder %s18, 0
      %p113 = por %p111, %p112
      %p114 = scmp.le.s32.totalorder 1, %s12
      %p115 = scmp.lt.s32.totalorder %s12, 3
      %p116 = pnand %p114, %p115
      %p117 = pneg %p116
      // Predicated region
      $region9: #{tpu_custom_call.1} parent=5 // pred_check
        _
      $region10: #{tpu_custom_call.1} parent=5 // pred_check_branch
        %119 = sbr.rel (%p116) target = $region12
      $region11: #{tpu_custom_call.1} parent=5 // pred_region
        %s120 = ssub.s32 %s12, 1
        // Predicated region
        $region13: #{tpu_custom_call.1} parent=11 // pred_check
          %p121 = pneg %p59
        $region14: #{tpu_custom_call.1} parent=11 // pred_check_branch
          %123 = sbr.rel (%p121) target = $region16
        $region15: #{tpu_custom_call.1} parent=11 // pred_region
          _
        $region16: #{tpu_custom_call.1} parent=11 // pred_fallthru
          _
        // Predicated region
        $region17: #{tpu_custom_call.1} parent=11 // pred_check
          %p124 = pneg %p80
        $region18: #{tpu_custom_call.1} parent=11 // pred_check_branch
          %126 = sbr.rel (%p124) target = $region20
        $region19: #{tpu_custom_call.1} parent=11 // pred_region
          _
        $region20: #{tpu_custom_call.1} parent=11 // pred_fallthru
          _
      $region12: #{tpu_custom_call.1} parent=5 // pred_fallthru
        _
      %p127 = scmp.lt.s32.totalorder %s12, 2
      // Predicated region
      $region21: #{tpu_custom_call.1} parent=5 // pred_check
        %p128 = pneg %p127
      $region22: #{tpu_custom_call.1} parent=5 // pred_check_branch
        %130 = sbr.rel (%p128) target = $region24
      $region23: #{tpu_custom_call.1} parent=5 // pred_region
        // Predicated region
        $region25: #{tpu_custom_call.1} parent=23 // pred_check
          %p131 = pneg %p32
        $region26: #{tpu_custom_call.1} parent=23 // pred_check_branch
          %133 = sbr.rel (%p131) target = $region28
        $region27: #{tpu_custom_call.1} parent=23 // pred_region
          %s134 = smul.u32 8, %s12
          %p135 = scmp.lt.s32.totalorder %s134, 15
          %s136 = scalar_select %p135, %s134, 15
          %s137 = smul.addr %s136, 4
          %s138 = smul.addr %s137, 8
          %s139 = scalar_lea.vmem %s0, %s138
          %s140 = smul.u32 8, %s12
        $region28: #{tpu_custom_call.1} parent=23 // pred_fallthru
          _
      $region24: #{tpu_custom_call.1} parent=5 // pred_fallthru
        _
      %p141 = scmp.le.s32.totalorder 1, %s12
      %p142 = scmp.lt.s32.totalorder %s12, 3
      %p143 = pnand %p141, %p142
      %p144 = pneg %p143
      // Predicated region
      $region29: #{tpu_custom_call.1} parent=5 // pred_check
        _
      $region30: #{tpu_custom_call.1} parent=5 // pred_check_branch
        %146 = sbr.rel (%p143) target = $region32
      $region31: #{tpu_custom_call.1} parent=5 // pred_region
        %s147 = ssub.s32 %s12, 1
        %s148 = smul.u32 8, %s17
        %p149 = scmp.lt.s32.totalorder %s148, 15
        %s150 = scalar_select %p149, %s148, 15
        %s151 = smul.addr %s150, 4
        %s152 = smul.addr %s151, 8
        %s153 = scalar_lea.vmem %s0, %s152
        %p154 = pneg %p38
        %p155 = pneg %p35
        %p156 = pneg %p59
        %p157 = pneg %p56
        %p158 = pneg %p80
        %p159 = pneg %p77
        %p160 = pneg %p106
        %p161 = pneg %p103
        %s162 = sand.u32 %s93, 1
        %s163 = scalar_lea.sflag [#allocation3], %s162
        %s164 = sand.u32 %s93, 1
        %s165 = smul.addr %s164, 8
        %s166 = scalar_lea.vmem [#allocation2], %s165
        %s167 = smul.u32 8, %s17
        %p168 = scmp.lt.s32.totalorder %s167, 15
        %s169 = scalar_select %p168, %s167, 15
        %s170 = smul.addr %s169, 4
        %s171 = smul.addr %s170, 8
        %s172 = scalar_lea.vmem %s0, %s171
        %s173 = smul.u32 8, %s17
        %v175 = vld [vmem:[%s172] sm:$0xff]
        %v176 = vld [vmem:[%s172 + $0x8] sm:$0xff]
        %v177 = vld [vmem:[%s172 + $0x10] sm:$0xff]
        %v178 = vld [vmem:[%s172 + $0x18] sm:$0x1]
        %v179 = vld [vmem:[%s172 + $0x20] sm:$0xff]
        %v180 = vld [vmem:[%s172 + $0x28] sm:$0xff]
        %v181 = vld [vmem:[%s172 + $0x30] sm:$0xff]
        %v182 = vld [vmem:[%s172 + $0x38] sm:$0x1]
        %v183 = vld [vmem:[%s172 + $0x40] sm:$0xff]
        %v184 = vld [vmem:[%s172 + $0x48] sm:$0xff]
        %v185 = vld [vmem:[%s172 + $0x50] sm:$0xff]
        %v186 = vld [vmem:[%s172 + $0x58] sm:$0x1]
        %v187 = vld [vmem:[%s172 + $0x60] sm:$0xff]
        %v188 = vld [vmem:[%s172 + $0x68] sm:$0xff]
        %v189 = vld [vmem:[%s172 + $0x70] sm:$0xff]
        %v190 = vld [vmem:[%s172 + $0x78] sm:$0x1]
        %v191 = vld [vmem:[%s172 + $0x80] sm:$0xff]
        %v192 = vld [vmem:[%s172 + $0x88] sm:$0xff]
        %v193 = vld [vmem:[%s172 + $0x90] sm:$0xff]
        %v194 = vld [vmem:[%s172 + $0x98] sm:$0x1]
        %v195 = vld [vmem:[%s172 + $0xa0] sm:$0xff]
        %v196 = vld [vmem:[%s172 + $0xa8] sm:$0xff]
        %v197 = vld [vmem:[%s172 + $0xb0] sm:$0xff]
        %v198 = vld [vmem:[%s172 + $0xb8] sm:$0x1]
        %v199 = vld [vmem:[%s172 + $0xc0] sm:$0xff]
        %v200 = vld [vmem:[%s172 + $0xc8] sm:$0xff]
        %v201 = vld [vmem:[%s172 + $0xd0] sm:$0xff]
        %v202 = vld [vmem:[%s172 + $0xd8] sm:$0x1]
        %v203 = vld [vmem:[%s172 + $0xe0] sm:$0xff]
        %v204 = vld [vmem:[%s172 + $0xe8] sm:$0xff]
        %v205 = vld [vmem:[%s172 + $0xf0] sm:$0xff]
        %v206 = vld [vmem:[%s172 + $0xf8] sm:$0x1]
        %vm207 = vcmask 523264
        %v208 = vsel %vm207, %v175, 0.0
        %v209 = vsel %vm207, %v176, 0.0
        %v210 = vadd.f32 %v208, %v209
        %v211 = vsel %vm207, %v177, 0.0
        %v212 = vadd.f32 %v210, %v211
        %vm213 = vcmask 516096
        %v214 = vsel %vm213, %v178, 0.0
        %v215 = vadd.f32 %v212, %v214
        %v216 = vrot.slane %v215, 4
        %v217 = vadd.f32 %v215, %v216
        %v218 = vrot.slane %v217, 2
        %v219 = vadd.f32 %v217, %v218
        %v220 = vrot.slane %v219, 1
        %v221 = vadd.f32 %v219, %v220
        %v222 = vsel %vm207, %v179, 0.0
        %v223 = vsel %vm207, %v180, 0.0
        %v224 = vadd.f32 %v222, %v223
        %v225 = vsel %vm207, %v181, 0.0
        %v226 = vadd.f32 %v224, %v225
        %v227 = vsel %vm213, %v182, 0.0
        %v228 = vadd.f32 %v226, %v227
        %v229 = vrot.slane %v228, 4
        %v230 = vadd.f32 %v228, %v229
        %v231 = vrot.slane %v230, 2
        %v232 = vadd.f32 %v230, %v231
        %v233 = vrot.slane %v232, 1
        %v234 = vadd.f32 %v232, %v233
        %v235 = vsel %vm207, %v183, 0.0
        %v236 = vsel %vm207, %v184, 0.0
        %v237 = vadd.f32 %v235, %v236
        %v238 = vsel %vm207, %v185, 0.0
        %v239 = vadd.f32 %v237, %v238
        %v240 = vsel %vm213, %v186, 0.0
        %v241 = vadd.f32 %v239, %v240
        %v242 = vrot.slane %v241, 4
        %v243 = vadd.f32 %v241, %v242
        %v244 = vrot.slane %v243, 2
        %v245 = vadd.f32 %v243, %v244
        %v246 = vrot.slane %v245, 1
        %v247 = vadd.f32 %v245, %v246
        %v248 = vsel %vm207, %v187, 0.0
        %v249 = vsel %vm207, %v188, 0.0
        %v250 = vadd.f32 %v248, %v249
        %v251 = vsel %vm207, %v189, 0.0
        %v252 = vadd.f32 %v250, %v251
        %v253 = vsel %vm213, %v190, 0.0
        %v254 = vadd.f32 %v252, %v253
        %v255 = vrot.slane %v254, 4
        %v256 = vadd.f32 %v254, %v255
        %v257 = vrot.slane %v256, 2
        %v258 = vadd.f32 %v256, %v257
        %v259 = vrot.slane %v258, 1
        %v260 = vadd.f32 %v258, %v259
        %v261 = vsel %vm207, %v191, 0.0
        %v262 = vsel %vm207, %v192, 0.0
        %v263 = vadd.f32 %v261, %v262
        %v264 = vsel %vm207, %v193, 0.0
        %v265 = vadd.f32 %v263, %v264
        %v266 = vsel %vm213, %v194, 0.0
        %v267 = vadd.f32 %v265, %v266
        %v268 = vrot.slane %v267, 4
        %v269 = vadd.f32 %v267, %v268
        %v270 = vrot.slane %v269, 2
        %v271 = vadd.f32 %v269, %v270
        %v272 = vrot.slane %v271, 1
        %v273 = vadd.f32 %v271, %v272
        %v274 = vsel %vm207, %v195, 0.0
        %v275 = vsel %vm207, %v196, 0.0
        %v276 = vadd.f32 %v274, %v275
        %v277 = vsel %vm207, %v197, 0.0
        %v278 = vadd.f32 %v276, %v277
        %v279 = vsel %vm213, %v198, 0.0
        %v280 = vadd.f32 %v278, %v279
        %v281 = vrot.slane %v280, 4
        %v282 = vadd.f32 %v280, %v281
        %v283 = vrot.slane %v282, 2
        %v284 = vadd.f32 %v282, %v283
        %v285 = vrot.slane %v284, 1
        %v286 = vadd.f32 %v284, %v285
        %v287 = vsel %vm207, %v199, 0.0
        %v288 = vsel %vm207, %v200, 0.0
        %v289 = vadd.f32 %v287, %v288
        %v290 = vsel %vm207, %v201, 0.0
        %v291 = vadd.f32 %v289, %v290
        %v292 = vsel %vm213, %v202, 0.0
        %v293 = vadd.f32 %v291, %v292
        %v294 = vrot.slane %v293, 4
        %v295 = vadd.f32 %v293, %v294
        %v296 = vrot.slane %v295, 2
        %v297 = vadd.f32 %v295, %v296
        %v298 = vrot.slane %v297, 1
        %v299 = vadd.f32 %v297, %v298
        %v300 = vsel %vm207, %v203, 0.0
        %v301 = vsel %vm207, %v204, 0.0
        %v302 = vadd.f32 %v300, %v301
        %v303 = vsel %vm207, %v205, 0.0
        %v304 = vadd.f32 %v302, %v303
        %v305 = vsel %vm213, %v206, 0.0
        %v306 = vadd.f32 %v304, %v305
        %v307 = vrot.slane %v306, 4
        %v308 = vadd.f32 %v306, %v307
        %v309 = vrot.slane %v308, 2
        %v310 = vadd.f32 %v308, %v309
        %v311 = vrot.slane %v310, 1
        %v312 = vadd.f32 %v310, %v311
        %v313 = vrcp.pop 25.0
        %v314 = vmul.f32 %v221, %v313
        %v315 = vmul.f32 %v234, %v313
        %v316 = vmul.f32 %v247, %v313
        %v317 = vmul.f32 %v260, %v313
        %v318 = vmul.f32 %v273, %v313
        %v319 = vmul.f32 %v286, %v313
        %v320 = vmul.f32 %v299, %v313
        %v321 = vmul.f32 %v312, %v313
        %v322 = vpack.c.bf16 %v314, %v314
        %v323 = vpack.c.bf16 %v315, %v315
        %v324 = vpack.c.bf16 %v316, %v316
        %v325 = vpack.c.bf16 %v317, %v317
        %v326 = vpack.c.bf16 %v318, %v318
        %v327 = vpack.c.bf16 %v319, %v319
        %v328 = vpack.c.bf16 %v320, %v320
        %v329 = vpack.c.bf16 %v321, %v321
        %v330 = vld [vmem:[%s1] sm:$0xf]
        %v331 = vld [vmem:[%s1 + $0x4] sm:$0xf]
        %v332 = vld [vmem:[%s1 + $0x8] sm:$0xf]
        %v333 = vld [vmem:[%s1 + $0xc] sm:$0xf]
        %v334 = vld [vmem:[%s1 + $0x10] sm:$0xf]
        %v335 = vld [vmem:[%s1 + $0x14] sm:$0xf]
        %v336 = vld [vmem:[%s1 + $0x18] sm:$0xf]
        %v337 = vld [vmem:[%s1 + $0x1c] sm:$0xf]
        %v338 = vld [vmem:[%s1 + $0x20] sm:$0xf]
        %v339 = vld [vmem:[%s1 + $0x24] sm:$0xf]
        %v340 = vld [vmem:[%s1 + $0x28] sm:$0xf]
        %v341 = vld [vmem:[%s1 + $0x2c] sm:$0xf]
        %v342 = vld [vmem:[%s1 + $0x30] sm:$0xf]
        %v343 = vld [vmem:[%s1 + $0x34] sm:$0xf]
        %v344 = vld [vmem:[%s1 + $0x38] sm:$0xf]
        %v345 = vld [vmem:[%s1 + $0x3c] sm:$0xf]
        %v346 = vld [vmem:[%s1 + $0x40] sm:$0xf]
        %v347 = vld [vmem:[%s1 + $0x44] sm:$0xf]
        %v348 = vld [vmem:[%s1 + $0x48] sm:$0xf]
        %v349 = vld [vmem:[%s1 + $0x4c] sm:$0xf]
        %v350 = vld [vmem:[%s1 + $0x50] sm:$0xf]
        %v351 = vld [vmem:[%s1 + $0x54] sm:$0xf]
        %v352 = vld [vmem:[%s1 + $0x58] sm:$0xf]
        %v353 = vld [vmem:[%s1 + $0x5c] sm:$0xf]
        %v354 = vld [vmem:[%s1 + $0x60] sm:$0xf]
        %v355 = vld [vmem:[%s1 + $0x64] sm:$0xf]
        %v356 = vld [vmem:[%s1 + $0x68] sm:$0xf]
        %v357 = vld [vmem:[%s1 + $0x6c] sm:$0xf]
        %v358 = vld [vmem:[%s1 + $0x70] sm:$0xf]
        %v359 = vld [vmem:[%s1 + $0x74] sm:$0xf]
        %v360 = vld [vmem:[%s1 + $0x78] sm:$0xf]
        %v361 = vld [vmem:[%s1 + $0x7c] sm:$0xf]
        %v362 = vld [vmem:[%s1 + $0x80] sm:$0xf]
        %v363 = vld [vmem:[%s1 + $0x84] sm:$0xf]
        %v364 = vld [vmem:[%s1 + $0x88] sm:$0xf]
        %v365 = vld [vmem:[%s1 + $0x8c] sm:$0xf]
        %v366 = vld [vmem:[%s1 + $0x90] sm:$0xf]
        %v367 = vld [vmem:[%s1 + $0x94] sm:$0xf]
        %v368 = vld [vmem:[%s1 + $0x98] sm:$0xf]
        %v369 = vld [vmem:[%s1 + $0x9c] sm:$0xf]
        %v370 = vld [vmem:[%s2] sm:$0x1]
        %v371 = vld [vmem:[%s2 + $0x1] sm:$0x1]
        %v372 = vld [vmem:[%s2 + $0x2] sm:$0x1]
        %v373 = vlaneseq
        %v374 = vshrl.u32 %v373, 7
        %v375 = vsub.s32 0, %v374
        %v376 = vrot.slane %v370, %v375
        %v385 = vunpack.c.l.b16 %v322
        %v386 = vunpack.c.l.b16 %v323
        %v387 = vunpack.c.l.b16 %v324
        %v388 = vunpack.c.l.b16 %v325
        %v389 = vunpack.c.l.b16 %v326
        %v390 = vunpack.c.l.b16 %v327
        %v391 = vunpack.c.l.b16 %v328
        %v392 = vunpack.c.l.b16 %v329
        %vm393 = vcmask 1041409
        %v394 = vsel %vm393, %v386, %v385
        %vm395 = vcmask 1042434
        %v396 = vsel %vm395, %v387, %v394
        %vm397 = vcmask 1043459
        %v398 = vsel %vm397, %v388, %v396
        %vm399 = vcmask 1044484
        %v400 = vsel %vm399, %v389, %v398
        %vm401 = vcmask 1045509
        %v402 = vsel %vm401, %v390, %v400
        %vm403 = vcmask 1046534
        %v404 = vsel %vm403, %v391, %v402
        %vm405 = vcmask 1047559
        %v406 = vsel %vm405, %v392, %v404
        %v407 = vpack.c.b16 %v406, %v406
        %v416 = vunpack.c.l.b16 %v330
        %v417 = vunpack.c.l.b16 %v331
        %v418 = vunpack.c.l.b16 %v332
        %v419 = vunpack.c.l.b16 %v333
        %v420 = vunpack.c.l.b16 %v334
        %v421 = vunpack.c.l.b16 %v335
        %v422 = vunpack.c.l.b16 %v336
        %v423 = vunpack.c.l.b16 %v337
        %v424 = vpack.c.b16 %v417, %v416
        %v425 = vpack.c.b16 %v419, %v418
        %v426 = vpack.c.b16 %v421, %v420
        %v427 = vpack.c.b16 %v423, %v422
        %v433 = vsel %vm207, %v407, 0
        %435 = vmatprep.subr.bf16.mxu0 0
        %436 = vmatpush1.bf16.msra.mxu0 %v424
        %437 = vmatprep.subr.bf16.mxu0 0
        %438 = vmatpush1.bf16.msra.mxu0 %v425
        %439 = vmatprep.subr.bf16.mxu0 0
        %440 = vmatpush1.bf16.msra.mxu0 %v426
        %441 = vmatprep.subr.bf16.mxu0 0
        %442 = vmatpush1.bf16.msra.mxu0 %v427
        %443 = vmatprep.subr.bf16.mxu0 0
        %444 = vmatpush1.bf16.msra.mxu0 0
        %445 = vmatprep.subr.bf16.mxu0 0
        %446 = vmatpush1.bf16.msra.mxu0 0
        %447 = vmatprep.subr.bf16.mxu0 0
        %448 = vmatpush1.bf16.msra.mxu0 0
        %449 = vmatprep.subr.bf16.mxu0 0
        %450 = vmatpush1.bf16.msra.mxu0 0
        %451 = vmatprep.subr.bf16.mxu0 0
        %452 = vmatpush1.bf16.msra.mxu0 0
        %453 = vmatprep.subr.bf16.mxu0 0
        %454 = vmatpush1.bf16.msra.mxu0 0
        %455 = vmatprep.subr.bf16.mxu0 0
        %456 = vmatpush1.bf16.msra.mxu0 0
        %457 = vmatprep.subr.bf16.mxu0 0
        %458 = vmatpush1.bf16.msra.mxu0 0
        %459 = vmatprep.subr.bf16.mxu0 0
        %460 = vmatpush1.bf16.msra.mxu0 0
        %461 = vmatprep.subr.bf16.mxu0 0
        %462 = vmatpush1.bf16.msra.mxu0 0
        %463 = vmatprep.subr.bf16.mxu0 0
        %464 = vmatpush1.bf16.msra.mxu0 0
        %465 = vmatprep.subr.bf16.mxu0 0
        %466 = vmatpush1.bf16.msra.mxu0 0
        %467 = vmatprep.mubr.bf16.mxu0 0
        %468 = vmatmul.mubr.bf16.gmra.mrb[0].mxu0 %v433
        %v469 = vpop.f32.mrb[0].mxu0
        %v470 = vadd.f32 %v376, %v469
        %v471 = vpop.f32.mrb[0].mxu0
        %v472 = vpop.f32.mrb[0].mxu0
        %v473 = vpop.f32.mrb[0].mxu0
        %474 = vdwg.mxu0
        %v475 = vmax.f32 %v470, 0.0
        %v476 = vpack.c.bf16 %v475, %v475
        %v477 = vlaneseq
        %v478 = vshrl.u32 %v477, 7
        %v479 = vsub.s32 0, %v478
        %v480 = vrot.slane %v371, %v479
        %v497 = vunpack.c.l.b16 %v338
        %v498 = vunpack.c.l.b16 %v339
        %v499 = vunpack.c.l.b16 %v340
        %v500 = vunpack.c.l.b16 %v341
        %v501 = vunpack.c.l.b16 %v342
        %v502 = vunpack.c.l.b16 %v343
        %v503 = vunpack.c.l.b16 %v344
        %v504 = vunpack.c.l.b16 %v345
        %v505 = vunpack.c.l.b16 %v346
        %v506 = vunpack.c.l.b16 %v347
        %v507 = vunpack.c.l.b16 %v348
        %v508 = vunpack.c.l.b16 %v349
        %v509 = vunpack.c.l.b16 %v350
        %v510 = vunpack.c.l.b16 %v351
        %v511 = vunpack.c.l.b16 %v352
        %v512 = vunpack.c.l.b16 %v353
        %v513 = vpack.c.b16 %v498, %v497
        %v514 = vpack.c.b16 %v500, %v499
        %v515 = vpack.c.b16 %v502, %v501
        %v516 = vpack.c.b16 %v504, %v503
        %v517 = vpack.c.b16 %v506, %v505
        %v518 = vpack.c.b16 %v508, %v507
        %v519 = vpack.c.b16 %v510, %v509
        %v520 = vpack.c.b16 %v512, %v511
        %529 = vmatprep.subr.bf16.mxu0 0
        %530 = vmatpush1.bf16.msra.mxu0 %v513
        %531 = vmatprep.subr.bf16.mxu0 0
        %532 = vmatpush1.bf16.msra.mxu0 %v514
        %533 = vmatprep.subr.bf16.mxu0 0
        %534 = vmatpush1.bf16.msra.mxu0 %v515
        %535 = vmatprep.subr.bf16.mxu0 0
        %536 = vmatpush1.bf16.msra.mxu0 %v516
        %537 = vmatprep.subr.bf16.mxu0 0
        %538 = vmatpush1.bf16.msra.mxu0 %v517
        %539 = vmatprep.subr.bf16.mxu0 0
        %540 = vmatpush1.bf16.msra.mxu0 %v518
        %541 = vmatprep.subr.bf16.mxu0 0
        %542 = vmatpush1.bf16.msra.mxu0 %v519
        %543 = vmatprep.subr.bf16.mxu0 0
        %544 = vmatpush1.bf16.msra.mxu0 %v520
        %545 = vmatprep.subr.bf16.mxu0 0
        %546 = vmatpush1.bf16.msra.mxu0 0
        %547 = vmatprep.subr.bf16.mxu0 0
        %548 = vmatpush1.bf16.msra.mxu0 0
        %549 = vmatprep.subr.bf16.mxu0 0
        %550 = vmatpush1.bf16.msra.mxu0 0
        %551 = vmatprep.subr.bf16.mxu0 0
        %552 = vmatpush1.bf16.msra.mxu0 0
        %553 = vmatprep.subr.bf16.mxu0 0
        %554 = vmatpush1.bf16.msra.mxu0 0
        %555 = vmatprep.subr.bf16.mxu0 0
        %556 = vmatpush1.bf16.msra.mxu0 0
        %557 = vmatprep.subr.bf16.mxu0 0
        %558 = vmatpush1.bf16.msra.mxu0 0
        %559 = vmatprep.subr.bf16.mxu0 0
        %560 = vmatpush1.bf16.msra.mxu0 0
        %561 = vmatprep.mubr.bf16.mxu0 0
        %562 = vmatmul.mubr.bf16.gmra.mrb[0].mxu0 %v476
        %v563 = vpop.f32.mrb[0].mxu0
        %v564 = vadd.f32 %v480, %v563
        %v565 = vpop.f32.mrb[0].mxu0
        %v566 = vpop.f32.mrb[0].mxu0
        %v567 = vpop.f32.mrb[0].mxu0
        %568 = vdwg.mxu0
        %v569 = vmax.f32 %v564, 0.0
        %v570 = vpack.c.bf16 %v569, %v569
        %v571 = vlaneseq
        %v572 = vshrl.u32 %v571, 7
        %v573 = vsub.s32 0, %v572
        %v574 = vrot.slane %v372, %v573
        %v591 = vunpack.c.l.b16 %v354
        %v592 = vunpack.c.l.b16 %v355
        %v593 = vunpack.c.l.b16 %v356
        %v594 = vunpack.c.l.b16 %v357
        %v595 = vunpack.c.l.b16 %v358
        %v596 = vunpack.c.l.b16 %v359
        %v597 = vunpack.c.l.b16 %v360
        %v598 = vunpack.c.l.b16 %v361
        %v599 = vunpack.c.l.b16 %v362
        %v600 = vunpack.c.l.b16 %v363
        %v601 = vunpack.c.l.b16 %v364
        %v602 = vunpack.c.l.b16 %v365
        %v603 = vunpack.c.l.b16 %v366
        %v604 = vunpack.c.l.b16 %v367
        %v605 = vunpack.c.l.b16 %v368
        %v606 = vunpack.c.l.b16 %v369
        %v607 = vpack.c.b16 %v592, %v591
        %v608 = vpack.c.b16 %v594, %v593
        %v609 = vpack.c.b16 %v596, %v595
        %v610 = vpack.c.b16 %v598, %v597
        %v611 = vpack.c.b16 %v600, %v599
        %v612 = vpack.c.b16 %v602, %v601
        %v613 = vpack.c.b16 %v604, %v603
        %v614 = vpack.c.b16 %v606, %v605
        %623 = vmatprep.subr.bf16.mxu0 0
        %624 = vmatpush1.bf16.msra.mxu0 %v607
        %625 = vmatprep.subr.bf16.mxu0 0
        %626 = vmatpush1.bf16.msra.mxu0 %v608
        %627 = vmatprep.subr.bf16.mxu0 0
        %628 = vmatpush1.bf16.msra.mxu0 %v609
        %629 = vmatprep.subr.bf16.mxu0 0
        %630 = vmatpush1.bf16.msra.mxu0 %v610
        %631 = vmatprep.subr.bf16.mxu0 0
        %632 = vmatpush1.bf16.msra.mxu0 %v611
        %633 = vmatprep.subr.bf16.mxu0 0
        %634 = vmatpush1.bf16.msra.mxu0 %v612
        %635 = vmatprep.subr.bf16.mxu0 0
        %636 = vmatpush1.bf16.msra.mxu0 %v613
        %637 = vmatprep.subr.bf16.mxu0 0
        %638 = vmatpush1.bf16.msra.mxu0 %v614
        %639 = vmatprep.subr.bf16.mxu0 0
        %640 = vmatpush1.bf16.msra.mxu0 0
        %641 = vmatprep.subr.bf16.mxu0 0
        %642 = vmatpush1.bf16.msra.mxu0 0
        %643 = vmatprep.subr.bf16.mxu0 0
        %644 = vmatpush1.bf16.msra.mxu0 0
        %645 = vmatprep.subr.bf16.mxu0 0
        %646 = vmatpush1.bf16.msra.mxu0 0
        %647 = vmatprep.subr.bf16.mxu0 0
        %648 = vmatpush1.bf16.msra.mxu0 0
        %649 = vmatprep.subr.bf16.mxu0 0
        %650 = vmatpush1.bf16.msra.mxu0 0
        %651 = vmatprep.subr.bf16.mxu0 0
        %652 = vmatpush1.bf16.msra.mxu0 0
        %653 = vmatprep.subr.bf16.mxu0 0
        %654 = vmatpush1.bf16.msra.mxu0 0
        %655 = vmatprep.mubr.bf16.mxu0 0
        %656 = vmatmul.mubr.bf16.gmra.mrb[0].mxu0 %v570
        %v657 = vpop.f32.mrb[0].mxu0
        %v658 = vadd.f32 %v574, %v657
        %v659 = vpop.f32.mrb[0].mxu0
        %v660 = vpop.f32.mrb[0].mxu0
        %v661 = vpop.f32.mrb[0].mxu0
        %662 = vdwg.mxu0
        %v663 = vlaneseq
        %v664 = vand.u32 %v663, 127
        %vm665 = vcmp.lt.s32.totalorder %v664, 25
        %v666 = vsel %vm665, %v658, -1e+30
        %667 = vmax.xlane.f32.xlu0 %v666
        %v668 = vpop.xlane.xlu0 %667
        %v669 = vsub.f32 %v666, %v668
        %v670 = vmul.f32 %v669, 1.442695
        %v671 = vpow.pop %v670
        %672 = vadd.xlane.f32.xlu0 %v671
        %v673 = vpop.xlane.xlu0 %672
        %v674 = vrcp.pop %v673
        %v675 = vmul.f32 %v671, %v674
        %vm676 = vcmp.eq.s32.totalorder %v664, 25
        %v677 = vsel %vm676, %v658, 0.0
        %v678 = vadd.f32 %v675, %v677
        %679 = vst [vmem:[%s166] sm:$0xff] %v678
        %s680 = sand.u32 %s93, 1
        %s681 = scalar_lea.sflag [#allocation3], %s680
        %s682 = sand.u32 %s93, 1
        %s683 = smul.addr %s682, 8
        %s684 = scalar_lea.vmem [#allocation2], %s683
        // Predicated region
        $region33: #{tpu_custom_call.1} parent=31 // pred_check
          %p685 = pneg %p103
        $region34: #{tpu_custom_call.1} parent=31 // pred_check_branch
          %687 = sbr.rel (%p685) target = $region36
        $region35: #{tpu_custom_call.1} parent=31 // pred_region
          %s689 = ssub.s32 128, 128
          %690 = vsyncadd %s681, %s689
          %s691 = smul.addr %s17, 128
          %s692 = scalar_lea.hbm %s3, %s691
          %s694 = sshll.u32 %s684, 4
          %s695 = int_to_ptr.vmem [resolvable:$true] %s694
          %697 = dma.vmem_to_hbm [thread:$0]  %s695, 128, %s692, %s681
        $region36: #{tpu_custom_call.1} parent=31 // pred_fallthru
          _
      $region32: #{tpu_custom_call.1} parent=5 // pred_fallthru
        _
      %p698 = scmp.le.s32.totalorder 2, %s12
      // Predicated region
      $region37: #{tpu_custom_call.1} parent=5 // pred_check
        %p699 = pneg %p698
      $region38: #{tpu_custom_call.1} parent=5 // pred_check_branch
        %701 = sbr.rel (%p699) target = $region40
      $region39: #{tpu_custom_call.1} parent=5 // pred_region
        %s702 = ssub.s32 %s12, 2
        // Predicated region
        $region41: #{tpu_custom_call.1} parent=39 // pred_check
          %p703 = pneg %p109
        $region42: #{tpu_custom_call.1} parent=39 // pred_check_branch
          %705 = sbr.rel (%p703) target = $region44
        $region43: #{tpu_custom_call.1} parent=39 // pred_region
          %s706 = sand.u32 %s94, 1
          %s707 = scalar_lea.sflag [#allocation3], %s706
          %s708 = sand.u32 %s94, 1
          %s709 = smul.addr %s708, 8
          %s710 = scalar_lea.vmem [#allocation2], %s709
          %711 = dma.done %s707, 128
        $region44: #{tpu_custom_call.1} parent=39 // pred_fallthru
          _
      $region40: #{tpu_custom_call.1} parent=5 // pred_fallthru
        _
    $region6: #{tpu_custom_call.1} parent=1 // loop_footer
      %s16 = sadd.s32 1, %s12
    $region7: #{tpu_custom_call.1} parent=1 // loop_footer_branch
      %11 = sbr.rel target = $region3
    $region8: #{tpu_custom_call.1} parent=1 // loop_exit
      _
    %712 = vsyncpa [#allocation3], 1
    %s713 = scalar_lea.sflag [#allocation3], 1
    %714 = vsyncpa %s713, 1

</llo_original>
